<compile_context>
chip_gen: v7x
topology: tpu7x:2x2x1
jax: 0.10.0
libtpu: 0.0.40
codegen_flags: <defaults>
</compile_context>

<pallas_src>
import math

import jax
import jax.numpy as jnp
import numpy as np
from jax.experimental import pallas as pl
from jax.experimental.pallas import tpu as pltpu

# Module hyper-parameters (PyTorch NRUCell defaults).
INPUT_SIZE = 16
HIDDEN_SIZE = 32
MEMORY_SIZE = 64
K = 4
SQRT_MEMK = int(math.sqrt(MEMORY_SIZE * K))   # 16
assert SQRT_MEMK * SQRT_MEMK == MEMORY_SIZE * K
GROUP = SQRT_MEMK // K                        # 4 = u0 lanes per rank-1 block
LANE = 128

# Carry-vector column layout: [x | h | memory | 1.0 | pad]
COL_X, COL_H, COL_M, COL_ONE = 0, 16, 48, 112
# Stage-2 output (z) column layout:
#   u0_a 0:16 | u0_b 16:32 | u1_a 32:48 | u1_b 48:64 |
#   alpha broadcast 64:80 | -beta broadcast 80:96 | zeros 96:128


# -----------------------------------------------------------------------------
# Kernel (built per (T, Tc) so the loop bounds / padding guard are static)
# -----------------------------------------------------------------------------
def _make_kernel(t_total, tc, t_pad, unroll):
    need_guard = (t_pad != t_total)

    def dotc(a, ref):
        return jnp.dot(a, ref[...], preferred_element_type=jnp.float32)

    def kernel(xin_ref, hm0_ref,
               w1_ref, w2_ref, sq_ref, rea_ref, reb_ref, tia_ref, tib_ref,
               h_seq_ref, m_out_ref, hm_c):
        chunk = pl.program_id(0)

        # Recurrent carry lives in VMEM scratch and persists across chunks.
        @pl.when(chunk == 0)
        def _init():
            hm_c[...] = hm0_ref[...]

        b = hm0_ref.shape[0]
        lane = jax.lax.broadcasted_iota(jnp.int32, (b, LANE), 1)
        # keep memory columns + the 1.0 bias column when building the stage-2
        # operand [0 | h_new | m_old | 1 | 0]
        keep_m1 = ((lane >= COL_M) & (lane <= COL_ONE)).astype(jnp.float32)

        def step(s, hm):
            # ---- stage 1: h = relu([x|h|m|1] @ W1), placed at cols 16..48 ----
            c = hm + xin_ref[s]                       # add this step's input x
            h_pl = jnp.maximum(dotc(c, w1_ref), 0.0)  # zeros outside h columns
            # TODO(synk): optional LayerNorm (layer_norm=True) not implemented.

            # ---- stage 2 (fused, gates folded into the weight) ----
            hm2 = hm * keep_m1 + h_pl                 # [0|h_t|m_{t-1}|1|0]
            z = dotc(hm2, w2_ref)                     # [B,128]
            gates = pltpu.roll(z, 64, axis=1)         # alpha | -beta aligned to u0

            # ---- p=5 norms of both rank-1 branches: one matmul + one roll,
            #      one log+exp for both branches ----
            az = jnp.abs(z)
            az2 = az * az
            a5 = az2 * az2 * az                       # |z|^5
            nz = dotc(a5, sq_ref)                     # group sums / totals
            norm5 = nz * pltpu.roll(nz, 64, axis=1)   # norm_a@0:16, norm_b@16:32
            inv = jnp.exp(-0.2 * jnp.log(jnp.maximum(norm5, 1e-37)))

            # ---- gated + normalized u0 (full-width, no lane slicing) ----
            o = (z * inv) * gates

            # ---- rank-1 expansion, 1/K mean, placed at memory cols 48..112 ---
            delta = (dotc(o, rea_ref) * dotc(z, tia_ref)
                     + dotc(o, reb_ref) * dotc(z, tib_ref))

            hm_new = hm2 + delta                      # h_t, m_t, 1.0 in place
            if need_guard:                            # ignore padded tail steps
                hm_new = jnp.where(chunk * tc + s < t_total, hm_new, hm)

            h_seq_ref[s] = h_pl                       # 128-lane-dense h store
            return hm_new

        hm_fin = jax.lax.fori_loop(0, tc, step, hm_c[...], unroll=unroll)
        hm_c[...] = hm_fin
        m_out_ref[...] = hm_fin                       # flushed once at grid end

    return kernel


# -----------------------------------------------------------------------------
# One-time parameter / constant preparation (hoisted out of the step path)
# -----------------------------------------------------------------------------
def prepare_params(params):
    """Fuse the PyTorch weights into the 128-lane carry/z layout and build the
    constant selection matrices. Call ONCE; reuse for every step / sequence."""
    (w_hmi2h, b_hmi2h, w_a, b_a, w_b, b_b, w_va, b_va, w_vb, b_vb) = [
        np.asarray(p, np.float32) for p in params]
    I, H, M, S = INPUT_SIZE, HIDDEN_SIZE, MEMORY_SIZE, SQRT_MEMK

    # ---- stage 1: carry[128] -> h placed at cols 16..48, bias via 1.0 col ---
    w1 = np.zeros((LANE, LANE), np.float32)
    w1[:I + H + M, COL_H:COL_H + H] = w_hmi2h     # input rows == carry columns
    w1[COL_ONE, COL_H:COL_H + H] = b_hmi2h

    # ---- stage 2: fused u-block + gate-broadcast block ----------------------
    def to_carry_rows(w):                          # [H+M, n] -> [128, n]
        out = np.zeros((LANE, w.shape[1]), np.float32)
        out[COL_H:COL_H + H] = w[:H]
        out[COL_M:COL_M + M] = w[H:]
        return out

    gate_bcast = np.repeat(np.eye(K, dtype=np.float32), GROUP, axis=1)  # [4,16]

    w2 = np.zeros((LANE, LANE), np.float32)
    w2[:, 0:16] = to_carry_rows(w_va[:, :S]);  w2[COL_ONE, 0:16] = b_va[:S]
    w2[:, 16:32] = to_carry_rows(w_vb[:, :S]); w2[COL_ONE, 16:32] = b_vb[:S]
    w2[:, 32:48] = to_carry_rows(w_va[:, S:]); w2[COL_ONE, 32:48] = b_va[S:]
    w2[:, 48:64] = to_carry_rows(w_vb[:, S:]); w2[COL_ONE, 48:64] = b_vb[S:]
    w2[:, 64:80] = to_carry_rows(w_a) @ gate_bcast
    w2[COL_ONE, 64:80] = b_a @ gate_bcast
    w2[:, 80:96] = to_carry_rows(-w_b) @ gate_bcast     # forget sign folded in
    w2[COL_ONE, 80:96] = (-b_b) @ gate_bcast

    # ---- |z|^5 -> per-group sums (S) and totals (Q), ONE matmul -------------
    r16 = np.arange(S)
    blk = (r16[:, None] // GROUP == r16[None, :] // GROUP).astype(np.float32)
    sq = np.zeros((LANE, LANE), np.float32)
    sq[0:16, 0:16] = blk          # S_alpha at cols 0:16
    sq[16:32, 16:32] = blk        # S_beta  at cols 16:32
    sq[32:48, 64:80] = 1.0        # Q_alpha at cols 64:80 (roll 64 pairs them)
    sq[48:64, 80:96] = 1.0        # Q_beta  at cols 80:96

    # ---- rank-1 scatter / tile constants, outputs at memory cols 48..112 ----
    m64 = np.arange(M)
    re = ((r16[:, None] % GROUP) == (m64[None, :] // S)).astype(np.float32) / K
    ti = (r16[:, None] == (m64[None, :] % S)).astype(np.float32)
    rea = np.zeros((LANE, LANE), np.float32); rea[0:16, COL_M:COL_M + M] = re
    reb = np.zeros((LANE, LANE), np.float32); reb[16:32, COL_M:COL_M + M] = re
    tia = np.zeros((LANE, LANE), np.float32); tia[32:48, COL_M:COL_M + M] = ti
    tib = np.zeros((LANE, LANE), np.float32); tib[48:64, COL_M:COL_M + M] = ti

    return tuple(jnp.asarray(a) for a in (w1, w2, sq, rea, reb, tia, tib))


# -----------------------------------------------------------------------------
# Wrappers
# -----------------------------------------------------------------------------
def nru_sequence(x_seq, h0, mem0, prepared, t_chunk=32):
    """Runs T NRUCell steps with a single pallas_call (grid over time chunks).
    Returns (h_seq [T,B,H], memory_final [B,M])."""
    T, B, I = x_seq.shape
    assert I == INPUT_SIZE
    tc = min(t_chunk, T)
    n_chunks = -(-T // tc)
    t_pad = n_chunks * tc
    unroll = True if tc <= 8 else 8

    # x padded into the 128-lane carry layout (host-side, once).
    xin = jnp.zeros((t_pad, B, LANE), jnp.float32)
    xin = xin.at[:T, :, COL_X:COL_X + INPUT_SIZE].set(x_seq.astype(jnp.float32))

    hm0 = jnp.zeros((B, LANE), jnp.float32)
    hm0 = (hm0.at[:, COL_H:COL_H + HIDDEN_SIZE].set(h0.astype(jnp.float32))
               .at[:, COL_M:COL_M + MEMORY_SIZE].set(mem0.astype(jnp.float32))
               .at[:, COL_ONE].set(1.0))

    kernel = _make_kernel(T, tc, t_pad, unroll)

    # Weights/constants use a constant index_map -> fetched once, kept in VMEM.
    in_specs = ([pl.BlockSpec((tc, B, LANE), lambda c: (c, 0, 0)),
                 pl.BlockSpec((B, LANE), lambda c: (0, 0))]
                + [pl.BlockSpec((LANE, LANE), lambda c: (0, 0))] * 7)
    out_specs = (pl.BlockSpec((tc, B, LANE), lambda c: (c, 0, 0)),   # h per chunk
                 pl.BlockSpec((B, LANE), lambda c: (0, 0)))          # final carry
    out_shape = (jax.ShapeDtypeStruct((t_pad, B, LANE), jnp.float32),
                 jax.ShapeDtypeStruct((B, LANE), jnp.float32))

    grid_spec = pltpu.PrefetchScalarGridSpec(
        num_scalar_prefetch=0,
        grid=(n_chunks,),
        in_specs=in_specs,
        out_specs=out_specs,
        scratch_shapes=[pltpu.VMEM((B, LANE), jnp.float32)],   # recurrent carry
    )
    h_pad, m_pad = pl.pallas_call(
        kernel,
        out_shape=out_shape,
        grid_spec=grid_spec,
        # Time is a true recurrence -> "arbitrary". (For large batch on v7x,
        # add a leading batch-tile axis marked "parallel" to use both TCs.)
        compiler_params=pltpu.CompilerParams(
            dimension_semantics=("arbitrary",)),
    )(xin, hm0, *prepared)

    h_seq = h_pad[:T, :, COL_H:COL_H + HIDDEN_SIZE]
    memory = m_pad[:, COL_M:COL_M + MEMORY_SIZE]
    return h_seq, memory


def nru_cell(x, h_prev, mem_prev, prepared):
    """One NRUCell step (== the PyTorch module's forward). Returns (h, memory)."""
    h_seq, mem_new = nru_sequence(x[None], h_prev, mem_prev, prepared)
    return h_seq[0], mem_new


# -----------------------------------------------------------------------------
# Pure-JAX reference (transcription of the PyTorch forward) + init
# -----------------------------------------------------------------------------
def nru_reference(x, h_prev, mem_prev, params):
    (w_hmi2h, b_hmi2h, w_a, b_a, w_b, b_b, w_va, b_va, w_vb, b_vb) = params
    c = jnp.concatenate([x, h_prev, mem_prev], axis=1)
    h = jax.nn.relu(c @ w_hmi2h + b_hmi2h)
    hm = jnp.concatenate([h, mem_prev], axis=1)
    alpha = hm @ w_a + b_a
    beta = hm @ w_b + b_b
    ua = hm @ w_va + b_va
    ub = hm @ w_vb + b_vb

    def normalized_v(u):
        u0, u1 = u[:, :SQRT_MEMK], u[:, SQRT_MEMK:]
        v = (u0[:, :, None] * u1[:, None, :]).reshape(-1, K, MEMORY_SIZE)
        norm5 = jnp.sum(jnp.abs(v) ** 5, axis=2, keepdims=True)
        norm = norm5 ** 0.2
        return v / jnp.maximum(norm, 1e-12)

    va, vb = normalized_v(ua), normalized_v(ub)
    mem_new = mem_prev + jnp.mean(alpha[:, :, None] * va - beta[:, :, None] * vb,
                                  axis=1)
    return h, mem_new


def init_params(key):
    """PyTorch-nn.Linear-style init (uniform(-1/sqrt(fan_in), 1/sqrt(fan_in)));
    weights stored pre-transposed as [in_features, out_features]."""
    def linear(k, fan_in, fan_out):
        kw, kb = jax.random.split(k)
        bound = 1.0 / math.sqrt(fan_in)
        w = jax.random.uniform(kw, (fan_in, fan_out), jnp.float32, -bound, bound)
        b = jax.random.uniform(kb, (fan_out,), jnp.float32, -bound, bound)
        return w, b

    ks = jax.random.split(key, 5)
    w_hmi2h, b_hmi2h = linear(ks[0], MEMORY_SIZE + HIDDEN_SIZE + INPUT_SIZE,
                              HIDDEN_SIZE)
    w_a, b_a = linear(ks[1], MEMORY_SIZE + HIDDEN_SIZE, K)
    w_b, b_b = linear(ks[2], MEMORY_SIZE + HIDDEN_SIZE, K)
    w_va, b_va = linear(ks[3], MEMORY_SIZE + HIDDEN_SIZE, 2 * SQRT_MEMK)
    w_vb, b_vb = linear(ks[4], MEMORY_SIZE + HIDDEN_SIZE, 2 * SQRT_MEMK)
    return (w_hmi2h, b_hmi2h, w_a, b_a, w_b, b_b, w_va, b_va, w_vb, b_vb)


if __name__ == "__main__":
    key = jax.random.PRNGKey(0)
    k_params, k_x, k_h, k_m, k_x2 = jax.random.split(key, 5)

    batch, seq = 4, 8
    params = init_params(k_params)
    prepared = prepare_params(params)          # one-time weight prep (hoisted)

    x_seq = jax.random.normal(k_x, (seq, batch, INPUT_SIZE), jnp.float32)
    h0 = jax.random.normal(k_h, (batch, HIDDEN_SIZE), jnp.float32)
    mem0 = jax.random.normal(k_m, (batch, MEMORY_SIZE), jnp.float32)

    # --- single step (the PyTorch module's forward) ---
    h1, m1 = jax.block_until_ready(nru_cell(x_seq[0], h0, mem0, prepared))
    h1_ref, m1_ref = nru_reference(x_seq[0], h0, mem0, params)
    assert h1.shape == (batch, HIDDEN_SIZE) and h1.dtype == jnp.float32
    assert m1.shape == (batch, MEMORY_SIZE) and m1.dtype == jnp.float32
    assert jnp.allclose(h1, h1_ref, atol=2e-4, rtol=2e-4), "h mismatch"
    assert jnp.allclose(m1, m1_ref, atol=2e-4, rtol=2e-4), "memory mismatch"

    # --- fused sequence: T steps, one kernel launch, one grid step ---
    h_seq, m_T = jax.block_until_ready(nru_sequence(x_seq, h0, mem0, prepared))
    h_r, m_r, h_list = h0, mem0, []
    for t in range(seq):
        h_r, m_r = nru_reference(x_seq[t], h_r, m_r, params)
        h_list.append(h_r)
    assert jnp.allclose(h_seq, jnp.stack(h_list), atol=1e-3, rtol=1e-3), \
        "h_seq mismatch"
    assert jnp.allclose(m_T, m_r, atol=1e-3, rtol=1e-3), "memory_seq mismatch"

    # --- odd-length sequence: exercises multi-chunk grid + padded-step guard --
    seq2 = 12
    x2 = jax.random.normal(k_x2, (seq2, batch, INPUT_SIZE), jnp.float32)
    h_seq2, m_T2 = jax.block_until_ready(
        nru_sequence(x2, h0, mem0, prepared, t_chunk=8))
    h_r, m_r, h_list2 = h0, mem0, []
    for t in range(seq2):
        h_r, m_r = nru_reference(x2[t], h_r, m_r, params)
        h_list2.append(h_r)
    assert jnp.allclose(h_seq2, jnp.stack(h_list2), atol=1e-3, rtol=1e-3), \
        "chunked h_seq mismatch"
    assert jnp.allclose(m_T2, m_r, atol=1e-3, rtol=1e-3), \
        "chunked memory mismatch"

    print("KERNEL_OK")
</pallas_src>

<mosaic_0001>
module attributes {stable_mosaic.version = 11 : i64} {
  func.func @kernel(%arg0: i32, %arg1: memref<1x4x128xf32, #tpu.memory_space<vmem>>, %arg2: memref<4x128xf32, #tpu.memory_space<vmem>>, %arg3: memref<128x128xf32, #tpu.memory_space<vmem>>, %arg4: memref<128x128xf32, #tpu.memory_space<vmem>>, %arg5: memref<128x128xf32, #tpu.memory_space<vmem>>, %arg6: memref<128x128xf32, #tpu.memory_space<vmem>>, %arg7: memref<128x128xf32, #tpu.memory_space<vmem>>, %arg8: memref<128x128xf32, #tpu.memory_space<vmem>>, %arg9: memref<128x128xf32, #tpu.memory_space<vmem>>, %arg10: memref<1x4x128xf32, #tpu.memory_space<vmem>>, %arg11: memref<4x128xf32, #tpu.memory_space<vmem>>, %arg12: memref<4x128xf32, #tpu.memory_space<vmem>>) attributes {dimension_semantics = [#tpu.dimension_semantics<arbitrary>], iteration_bounds = array<i64: 1>, scalar_prefetch = 0 : i64, scratch_operands = 1 : i64, tpu.core_type = #tpu.core_type<tc>, window_params = [{transform_indices = @transform_0, window_bounds = array<i64: 1, 4, 128>}, {pipeline_mode = #tpu.pipeline_mode<synchronous>, transform_indices = @transform_1, window_bounds = array<i64: 4, 128>}, {pipeline_mode = #tpu.pipeline_mode<synchronous>, transform_indices = @transform_2, window_bounds = array<i64: 128, 128>}, {pipeline_mode = #tpu.pipeline_mode<synchronous>, transform_indices = @transform_3, window_bounds = array<i64: 128, 128>}, {pipeline_mode = #tpu.pipeline_mode<synchronous>, transform_indices = @transform_4, window_bounds = array<i64: 128, 128>}, {pipeline_mode = #tpu.pipeline_mode<synchronous>, transform_indices = @transform_5, window_bounds = array<i64: 128, 128>}, {pipeline_mode = #tpu.pipeline_mode<synchronous>, transform_indices = @transform_6, window_bounds = array<i64: 128, 128>}, {pipeline_mode = #tpu.pipeline_mode<synchronous>, transform_indices = @transform_7, window_bounds = array<i64: 128, 128>}, {pipeline_mode = #tpu.pipeline_mode<synchronous>, transform_indices = @transform_8, window_bounds = array<i64: 128, 128>}, {transform_indices = @transform_9, window_bounds = array<i64: 1, 4, 128>}, {pipeline_mode = #tpu.pipeline_mode<synchronous>, transform_indices = @transform_10, window_bounds = array<i64: 4, 128>}]} {
    %c0_i32 = arith.constant 0 : i32
    %0 = arith.cmpi eq, %arg0, %c0_i32 : i32
    %1 = arith.extui %0 : i1 to i32
    %c0_i32_0 = arith.constant 0 : i32
    %2 = arith.cmpi ne, %1, %c0_i32_0 : i32
    scf.if %2 {
      %c0_35 = arith.constant 0 : index
      %c0_36 = arith.constant 0 : index
      %59 = vector.load %arg2[%c0_35, %c0_36] : memref<4x128xf32, #tpu.memory_space<vmem>>, vector<4x128xf32>
      %c0_37 = arith.constant 0 : index
      %c0_38 = arith.constant 0 : index
      %60 = vector.load %arg12[%c0_37, %c0_38] : memref<4x128xf32, #tpu.memory_space<vmem>>, vector<4x128xf32>
      tpu.vector_store %arg12[%c0_37, %c0_38], %59 {strides = array<i32>} : memref<4x128xf32, #tpu.memory_space<vmem>>, vector<4x128xf32>,
    } else {
    }
    %3 = tpu.iota {dimensions = array<i32: 1>} : vector<4x128xi32>
    %c48_i32 = arith.constant 48 : i32
    %4 = vector.broadcast %c48_i32 : i32 to vector<4x128xi32>
    %5 = arith.cmpi sge, %3, %4 : vector<4x128xi32>
    %c112_i32 = arith.constant 112 : i32
    %6 = vector.broadcast %c112_i32 : i32 to vector<4x128xi32>
    %7 = arith.cmpi sle, %3, %6 : vector<4x128xi32>
    %8 = arith.andi %5, %7 : vector<4x128xi1>
    %9 = arith.extui %8 : vector<4x128xi1> to vector<4x128xi32>
    %10 = arith.sitofp %9 : vector<4x128xi32> to vector<4x128xf32>
    %c0 = arith.constant 0 : index
    %c0_1 = arith.constant 0 : index
    %11 = vector.load %arg12[%c0, %c0_1] : memref<4x128xf32, #tpu.memory_space<vmem>>, vector<4x128xf32>
    %c0_i32_2 = arith.constant 0 : i32
    %12 = arith.index_cast %c0_i32_2 : i32 to index
    %c0_3 = arith.constant 0 : index
    %c0_4 = arith.constant 0 : index
    %13 = vector.load %arg1[%12, %c0_3, %c0_4] : memref<1x4x128xf32, #tpu.memory_space<vmem>>, vector<1x4x128xf32>
    %14 = vector.shape_cast %13 : vector<1x4x128xf32> to vector<4x128xf32>
    %15 = arith.addf %11, %14 : vector<4x128xf32>
    %c0_5 = arith.constant 0 : index
    %c0_6 = arith.constant 0 : index
    %16 = vector.load %arg3[%c0_5, %c0_6] : memref<128x128xf32, #tpu.memory_space<vmem>>, vector<128x128xf32>
    %cst = arith.constant dense<0.000000e+00> : vector<4x128xf32>
    %17 = tpu.matmul %15, %16, %cst {dimension_numbers = #tpu.dot_dimension_numbers<[1], [0], [0], [1], [0, 0, 1, 1], [], []>} : vector<4x128xf32>, vector<128x128xf32>, vector<4x128xf32> -> vector<4x128xf32>
    %cst_7 = arith.constant 0.000000e+00 : f32
    %18 = vector.broadcast %cst_7 : f32 to vector<4x128xf32>
    %19 = arith.maximumf %17, %18 : vector<4x128xf32>
    %20 = arith.mulf %11, %10 : vector<4x128xf32>
    %21 = arith.addf %20, %19 : vector<4x128xf32>
    %c0_8 = arith.constant 0 : index
    %c0_9 = arith.constant 0 : index
    %22 = vector.load %arg4[%c0_8, %c0_9] : memref<128x128xf32, #tpu.memory_space<vmem>>, vector<128x128xf32>
    %cst_10 = arith.constant dense<0.000000e+00> : vector<4x128xf32>
    %23 = tpu.matmul %21, %22, %cst_10 {dimension_numbers = #tpu.dot_dimension_numbers<[1], [0], [0], [1], [0, 0, 1, 1], [], []>} : vector<4x128xf32>, vector<128x128xf32>, vector<4x128xf32> -> vector<4x128xf32>
    %c64_i32 = arith.constant 64 : i32
    %24 = tpu.dynamic_rotate %23 by %c64_i32 dim 1 : vector<4x128xf32>, i32 -> vector<4x128xf32>
    %25 = math.absf %23 : vector<4x128xf32>
    %26 = arith.mulf %25, %25 : vector<4x128xf32>
    %27 = arith.mulf %26, %26 : vector<4x128xf32>
    %28 = arith.mulf %27, %25 : vector<4x128xf32>
    %c0_11 = arith.constant 0 : index
    %c0_12 = arith.constant 0 : index
    %29 = vector.load %arg5[%c0_11, %c0_12] : memref<128x128xf32, #tpu.memory_space<vmem>>, vector<128x128xf32>
    %cst_13 = arith.constant dense<0.000000e+00> : vector<4x128xf32>
    %30 = tpu.matmul %28, %29, %cst_13 {dimension_numbers = #tpu.dot_dimension_numbers<[1], [0], [0], [1], [0, 0, 1, 1], [], []>} : vector<4x128xf32>, vector<128x128xf32>, vector<4x128xf32> -> vector<4x128xf32>
    %c64_i32_14 = arith.constant 64 : i32
    %31 = tpu.dynamic_rotate %30 by %c64_i32_14 dim 1 : vector<4x128xf32>, i32 -> vector<4x128xf32>
    %32 = arith.mulf %30, %31 : vector<4x128xf32>
    %cst_15 = arith.constant 9.99999991E-38 : f32
    %33 = vector.broadcast %cst_15 : f32 to vector<4x128xf32>
    %34 = arith.maximumf %32, %33 : vector<4x128xf32>
    %35 = math.log %34 : vector<4x128xf32>
    %cst_16 = arith.constant -2.000000e-01 : f32
    %36 = vector.broadcast %cst_16 : f32 to vector<4x128xf32>
    %37 = arith.mulf %36, %35 : vector<4x128xf32>
    %38 = math.exp %37 : vector<4x128xf32>
    %39 = arith.mulf %23, %38 : vector<4x128xf32>
    %40 = arith.mulf %39, %24 : vector<4x128xf32>
    %c0_17 = arith.constant 0 : index
    %c0_18 = arith.constant 0 : index
    %41 = vector.load %arg6[%c0_17, %c0_18] : memref<128x128xf32, #tpu.memory_space<vmem>>, vector<128x128xf32>
    %cst_19 = arith.constant dense<0.000000e+00> : vector<4x128xf32>
    %42 = tpu.matmul %40, %41, %cst_19 {dimension_numbers = #tpu.dot_dimension_numbers<[1], [0], [0], [1], [0, 0, 1, 1], [], []>} : vector<4x128xf32>, vector<128x128xf32>, vector<4x128xf32> -> vector<4x128xf32>
    %c0_20 = arith.constant 0 : index
    %c0_21 = arith.constant 0 : index
    %43 = vector.load %arg8[%c0_20, %c0_21] : memref<128x128xf32, #tpu.memory_space<vmem>>, vector<128x128xf32>
    %cst_22 = arith.constant dense<0.000000e+00> : vector<4x128xf32>
    %44 = tpu.matmul %23, %43, %cst_22 {dimension_numbers = #tpu.dot_dimension_numbers<[1], [0], [0], [1], [0, 0, 1, 1], [], []>} : vector<4x128xf32>, vector<128x128xf32>, vector<4x128xf32> -> vector<4x128xf32>
    %45 = arith.mulf %42, %44 : vector<4x128xf32>
    %c0_23 = arith.constant 0 : index
    %c0_24 = arith.constant 0 : index
    %46 = vector.load %arg7[%c0_23, %c0_24] : memref<128x128xf32, #tpu.memory_space<vmem>>, vector<128x128xf32>
    %cst_25 = arith.constant dense<0.000000e+00> : vector<4x128xf32>
    %47 = tpu.matmul %40, %46, %cst_25 {dimension_numbers = #tpu.dot_dimension_numbers<[1], [0], [0], [1], [0, 0, 1, 1], [], []>} : vector<4x128xf32>, vector<128x128xf32>, vector<4x128xf32> -> vector<4x128xf32>
    %c0_26 = arith.constant 0 : index
    %c0_27 = arith.constant 0 : index
    %48 = vector.load %arg9[%c0_26, %c0_27] : memref<128x128xf32, #tpu.memory_space<vmem>>, vector<128x128xf32>
    %cst_28 = arith.constant dense<0.000000e+00> : vector<4x128xf32>
    %49 = tpu.matmul %23, %48, %cst_28 {dimension_numbers = #tpu.dot_dimension_numbers<[1], [0], [0], [1], [0, 0, 1, 1], [], []>} : vector<4x128xf32>, vector<128x128xf32>, vector<4x128xf32> -> vector<4x128xf32>
    %50 = arith.mulf %47, %49 : vector<4x128xf32>
    %51 = arith.addf %45, %50 : vector<4x128xf32>
    %52 = arith.addf %21, %51 : vector<4x128xf32>
    %53 = arith.index_cast %c0_i32_2 : i32 to index
    %c0_29 = arith.constant 0 : index
    %c0_30 = arith.constant 0 : index
    %54 = vector.load %arg10[%53, %c0_29, %c0_30] : memref<1x4x128xf32, #tpu.memory_space<vmem>>, vector<1x4x128xf32>
    %55 = vector.shape_cast %54 : vector<1x4x128xf32> to vector<4x128xf32>
    %56 = vector.shape_cast %19 : vector<4x128xf32> to vector<1x4x128xf32>
    tpu.vector_store %arg10[%53, %c0_29, %c0_30], %56 {strides = array<i32>} : memref<1x4x128xf32, #tpu.memory_space<vmem>>, vector<1x4x128xf32>,
    %c1_i32 = arith.constant 1 : i32
    %c0_31 = arith.constant 0 : index
    %c0_32 = arith.constant 0 : index
    %57 = vector.load %arg12[%c0_31, %c0_32] : memref<4x128xf32, #tpu.memory_space<vmem>>, vector<4x128xf32>
    tpu.vector_store %arg12[%c0_31, %c0_32], %52 {strides = array<i32>} : memref<4x128xf32, #tpu.memory_space<vmem>>, vector<4x128xf32>,
    %c0_33 = arith.constant 0 : index
    %c0_34 = arith.constant 0 : index
    %58 = vector.load %arg11[%c0_33, %c0_34] : memref<4x128xf32, #tpu.memory_space<vmem>>, vector<4x128xf32>
    tpu.vector_store %arg11[%c0_33, %c0_34], %52 {strides = array<i32>} : memref<4x128xf32, #tpu.memory_space<vmem>>, vector<4x128xf32>,
    return
  }
  func.func @transform_0(%arg0: i32) -> (i32, i32, i32) {
    %c0_i32 = arith.constant 0 : i32
    %c0_i32_0 = arith.constant 0 : i32
    %c0_i32_1 = arith.constant 0 : i32
    return %arg0, %c0_i32, %c0_i32_0 : i32, i32, i32
  }
  func.func @transform_1(%arg0: i32) -> (i32, i32) {
    %c0_i32 = arith.constant 0 : i32
    %c0_i32_0 = arith.constant 0 : i32
    %c0_i32_1 = arith.constant 0 : i32
    return %c0_i32, %c0_i32_0 : i32, i32
  }
  func.func @transform_2(%arg0: i32) -> (i32, i32) {
    %c0_i32 = arith.constant 0 : i32
    %c0_i32_0 = arith.constant 0 : i32
    %c0_i32_1 = arith.constant 0 : i32
    return %c0_i32, %c0_i32_0 : i32, i32
  }
  func.func @transform_3(%arg0: i32) -> (i32, i32) {
    %c0_i32 = arith.constant 0 : i32
    %c0_i32_0 = arith.constant 0 : i32
    %c0_i32_1 = arith.constant 0 : i32
    return %c0_i32, %c0_i32_0 : i32, i32
  }
  func.func @transform_4(%arg0: i32) -> (i32, i32) {
    %c0_i32 = arith.constant 0 : i32
    %c0_i32_0 = arith.constant 0 : i32
    %c0_i32_1 = arith.constant 0 : i32
    return %c0_i32, %c0_i32_0 : i32, i32
  }
  func.func @transform_5(%arg0: i32) -> (i32, i32) {
    %c0_i32 = arith.constant 0 : i32
    %c0_i32_0 = arith.constant 0 : i32
    %c0_i32_1 = arith.constant 0 : i32
    return %c0_i32, %c0_i32_0 : i32, i32
  }
  func.func @transform_6(%arg0: i32) -> (i32, i32) {
    %c0_i32 = arith.constant 0 : i32
    %c0_i32_0 = arith.constant 0 : i32
    %c0_i32_1 = arith.constant 0 : i32
    return %c0_i32, %c0_i32_0 : i32, i32
  }
  func.func @transform_7(%arg0: i32) -> (i32, i32) {
    %c0_i32 = arith.constant 0 : i32
    %c0_i32_0 = arith.constant 0 : i32
    %c0_i32_1 = arith.constant 0 : i32
    return %c0_i32, %c0_i32_0 : i32, i32
  }
  func.func @transform_8(%arg0: i32) -> (i32, i32) {
    %c0_i32 = arith.constant 0 : i32
    %c0_i32_0 = arith.constant 0 : i32
    %c0_i32_1 = arith.constant 0 : i32
    return %c0_i32, %c0_i32_0 : i32, i32
  }
  func.func @transform_9(%arg0: i32) -> (i32, i32, i32) {
    %c0_i32 = arith.constant 0 : i32
    %c0_i32_0 = arith.constant 0 : i32
    %c0_i32_1 = arith.constant 0 : i32
    return %arg0, %c0_i32, %c0_i32_0 : i32, i32, i32
  }
  func.func @transform_10(%arg0: i32) -> (i32, i32) {
    %c0_i32 = arith.constant 0 : i32
    %c0_i32_0 = arith.constant 0 : i32
    %c0_i32_1 = arith.constant 0 : i32
    return %c0_i32, %c0_i32_0 : i32, i32
  }
}

</mosaic_0001>

<llo_original>
// kernel: tpu_custom_call.1
$region0: #{tpu_custom_call.1}
  #allocation0 [shape = 'u32[]', space=smem, size = 0x4, offset = 0x4, fixed_abs, tag = 'smem constant byte address 0x4 - core index']
  #allocation1 [shape = 'u32[144,128]{1,0:T(1,128)}', space=vmem, size = 0x12000, scoped, tag = 'internal scratch']
  #allocation2 [shape = 'f32[4,128]{1,0:T(4,128)}', space=vmem, size = 0x800, scoped, tag = 'scratch operand']
  %s0 = inlined_call_operand.hbm [shape: f32[1,4,128], index: 0, kind: input, shape index: {}]
  %s1 = inlined_call_operand.hbm [shape: f32[4,128], index: 1, kind: input, shape index: {}]
  %s2 = inlined_call_operand.hbm [shape: f32[128,128], index: 2, kind: input, shape index: {}]
  %s3 = inlined_call_operand.hbm [shape: f32[128,128], index: 3, kind: input, shape index: {}]
  %s4 = inlined_call_operand.hbm [shape: f32[128,128], index: 4, kind: input, shape index: {}]
  %s5 = inlined_call_operand.hbm [shape: f32[128,128], index: 5, kind: input, shape index: {}]
  %s6 = inlined_call_operand.hbm [shape: f32[128,128], index: 6, kind: input, shape index: {}]
  %s7 = inlined_call_operand.hbm [shape: f32[128,128], index: 7, kind: input, shape index: {}]
  %s8 = inlined_call_operand.hbm [shape: f32[128,128], index: 8, kind: input, shape index: {}]
  %s9 = inlined_call_operand.hbm [shape: f32[1,4,128], index: 9, kind: output, shape index: {0}]
  %s10 = inlined_call_operand.hbm [shape: f32[4,128], index: 10, kind: output, shape index: {1}]
  %11 = xla_tuple %s9, %s10
  %s12 = sld [smem:[#allocation0]]
  $region94: #{tpu_custom_call.1} parent=0
    _
  %s14 = ssub.s32 1, %s12
  %s15 = scalar_select 0, %s14, %s12
  $region1: #{tpu_custom_call.1} parent=0
    #allocation3 [shape = 'u8[2048]{0}', space=vmem, size = 0x800, scoped, tag = 'input window, operand 0, single buffered']
    #allocation4 [shape = 's32[1]{0}', space=sflag, size = 0x4, scoped, tag = 'scoped memory for tpu_custom_call.1']
    #allocation5 [shape = 's32[1]{0}', space=sflag, size = 0x4, scoped, tag = 'scoped memory for tpu_custom_call.1']
    #allocation6 [shape = 'u8[2048]{0}', space=vmem, size = 0x800, scoped, tag = 'input window, operand 1, single buffered']
    #allocation7 [shape = 's32[1]{0}', space=sflag, size = 0x4, scoped, tag = 'scoped memory for tpu_custom_call.1']
    #allocation8 [shape = 'u8[65536]{0}', space=vmem, size = 0x10000, scoped, tag = 'input window, operand 2, single buffered']
    #allocation9 [shape = 'u8[65536]{0}', space=vmem, size = 0x10000, scoped, tag = 'input window, operand 3, single buffered']
    #allocation10 [shape = 's32[1]{0}', space=sflag, size = 0x4, scoped, tag = 'scoped memory for tpu_custom_call.1']
    #allocation11 [shape = 'u8[65536]{0}', space=vmem, size = 0x10000, scoped, tag = 'input window, operand 4, single buffered']
    #allocation12 [shape = 'u8[65536]{0}', space=vmem, size = 0x10000, scoped, tag = 'input window, operand 5, single buffered']
    #allocation13 [shape = 's32[1]{0}', space=sflag, size = 0x4, scoped, tag = 'scoped memory for tpu_custom_call.1']
    #allocation14 [shape = 'u8[65536]{0}', space=vmem, size = 0x10000, scoped, tag = 'input window, operand 6, single buffered']
    #allocation15 [shape = 'u8[65536]{0}', space=vmem, size = 0x10000, scoped, tag = 'input window, operand 7, single buffered']
    #allocation16 [shape = 's32[1]{0}', space=sflag, size = 0x4, scoped, tag = 'scoped memory for tpu_custom_call.1']
    #allocation17 [shape = 'u8[65536]{0}', space=vmem, size = 0x10000, scoped, tag = 'input window, operand 8, single buffered']
    #allocation18 [shape = 'u8[2048]{0}', space=vmem, size = 0x800, scoped, tag = 'output window, operand 0, single buffered']
    #allocation19 [shape = 'u8[2048]{0}', space=vmem, size = 0x800, scoped, tag = 'output window, operand 1, single buffered']
    #allocation20 [shape = 's32[1]{0}', space=sflag, size = 0x4, scoped, tag = 'scoped memory for tpu_custom_call.1']
    %16 = vsyncpa [#allocation4], 0
    %17 = vsyncpa [#allocation7], 0
    %18 = vsyncpa [#allocation10], 0
    %19 = vsyncpa [#allocation13], 0
    %20 = vsyncpa [#allocation16], 0
    %21 = vsyncpa [#allocation5], 0
    %22 = vsyncpa [#allocation20], 0
    // Predicated region
    $region2: #{tpu_custom_call.1} parent=1 // pred_check
      _
    $region3: #{tpu_custom_call.1} parent=1 // pred_check_branch
      %24 = sbr.rel (0) target = $region5
    $region4: #{tpu_custom_call.1} parent=1 // pred_region
      %s26 = ssub.s32 64, 64
      %27 = vsyncadd [#allocation4], %s26
      %s29 = sshll.u32 [#allocation3], 4
      %s30 = int_to_ptr.vmem [resolvable:$true] %s29
      %32 = dma.hbm_to_vmem [thread:$0]  %s0, 64, %s30, [#allocation4]
    $region5: #{tpu_custom_call.1} parent=1 // pred_fallthru
      _
    // Predicated region
    $region6: #{tpu_custom_call.1} parent=1 // pred_check
      _
    $region7: #{tpu_custom_call.1} parent=1 // pred_check_branch
      %34 = sbr.rel (0) target = $region9
    $region8: #{tpu_custom_call.1} parent=1 // pred_region
      %s36 = ssub.s32 64, 64
      %37 = vsyncadd [#allocation7], %s36
      %s39 = sshll.u32 [#allocation6], 4
      %s40 = int_to_ptr.vmem [resolvable:$true] %s39
      %42 = dma.hbm_to_vmem [thread:$0]  %s1, 64, %s40, [#allocation7]
    $region9: #{tpu_custom_call.1} parent=1 // pred_fallthru
      _
    // Predicated region
    $region10: #{tpu_custom_call.1} parent=1 // pred_check
      _
    $region11: #{tpu_custom_call.1} parent=1 // pred_check_branch
      %44 = sbr.rel (0) target = $region13
    $region12: #{tpu_custom_call.1} parent=1 // pred_region
      %s46 = ssub.s32 2048, 2048
      %47 = vsyncadd [#allocation7], %s46
      %s48 = sshll.u32 [#allocation8], 4
      %s49 = int_to_ptr.vmem [resolvable:$true] %s48
      %54 = dma.hbm_to_vmem [thread:$0]  %s2, 2048, %s49, [#allocation7], 128, 128, 8
    $region13: #{tpu_custom_call.1} parent=1 // pred_fallthru
      _
    // Predicated region
    $region14: #{tpu_custom_call.1} parent=1 // pred_check
      _
    $region15: #{tpu_custom_call.1} parent=1 // pred_check_branch
      %56 = sbr.rel (0) target = $region17
    $region16: #{tpu_custom_call.1} parent=1 // pred_region
      %s58 = ssub.s32 2048, 2048
      %59 = vsyncadd [#allocation10], %s58
      %s60 = sshll.u32 [#allocation9], 4
      %s61 = int_to_ptr.vmem [resolvable:$true] %s60
      %66 = dma.hbm_to_vmem [thread:$0]  %s3, 2048, %s61, [#allocation10], 128, 128, 8
    $region17: #{tpu_custom_call.1} parent=1 // pred_fallthru
      _
    // Predicated region
    $region18: #{tpu_custom_call.1} parent=1 // pred_check
      _
    $region19: #{tpu_custom_call.1} parent=1 // pred_check_branch
      %68 = sbr.rel (0) target = $region21
    $region20: #{tpu_custom_call.1} parent=1 // pred_region
      %s70 = ssub.s32 2048, 2048
      %71 = vsyncadd [#allocation10], %s70
      %s72 = sshll.u32 [#allocation11], 4
      %s73 = int_to_ptr.vmem [resolvable:$true] %s72
      %78 = dma.hbm_to_vmem [thread:$0]  %s4, 2048, %s73, [#allocation10], 128, 128, 8
    $region21: #{tpu_custom_call.1} parent=1 // pred_fallthru
      _
    // Predicated region
    $region22: #{tpu_custom_call.1} parent=1 // pred_check
      _
    $region23: #{tpu_custom_call.1} parent=1 // pred_check_branch
      %80 = sbr.rel (0) target = $region25
    $region24: #{tpu_custom_call.1} parent=1 // pred_region
      %s82 = ssub.s32 2048, 2048
      %83 = vsyncadd [#allocation13], %s82
      %s84 = sshll.u32 [#allocation12], 4
      %s85 = int_to_ptr.vmem [resolvable:$true] %s84
      %90 = dma.hbm_to_vmem [thread:$0]  %s5, 2048, %s85, [#allocation13], 128, 128, 8
    $region25: #{tpu_custom_call.1} parent=1 // pred_fallthru
      _
    // Predicated region
    $region26: #{tpu_custom_call.1} parent=1 // pred_check
      _
    $region27: #{tpu_custom_call.1} parent=1 // pred_check_branch
      %92 = sbr.rel (0) target = $region29
    $region28: #{tpu_custom_call.1} parent=1 // pred_region
      %s94 = ssub.s32 2048, 2048
      %95 = vsyncadd [#allocation13], %s94
      %s96 = sshll.u32 [#allocation14], 4
      %s97 = int_to_ptr.vmem [resolvable:$true] %s96
      %102 = dma.hbm_to_vmem [thread:$0]  %s6, 2048, %s97, [#allocation13], 128, 128, 8
    $region29: #{tpu_custom_call.1} parent=1 // pred_fallthru
      _
    // Predicated region
    $region30: #{tpu_custom_call.1} parent=1 // pred_check
      _
    $region31: #{tpu_custom_call.1} parent=1 // pred_check_branch
      %104 = sbr.rel (0) target = $region33
    $region32: #{tpu_custom_call.1} parent=1 // pred_region
      %s106 = ssub.s32 2048, 2048
      %107 = vsyncadd [#allocation16], %s106
      %s108 = sshll.u32 [#allocation15], 4
      %s109 = int_to_ptr.vmem [resolvable:$true] %s108
      %114 = dma.hbm_to_vmem [thread:$0]  %s7, 2048, %s109, [#allocation16], 128, 128, 8
    $region33: #{tpu_custom_call.1} parent=1 // pred_fallthru
      _
    // Predicated region
    $region34: #{tpu_custom_call.1} parent=1 // pred_check
      _
    $region35: #{tpu_custom_call.1} parent=1 // pred_check_branch
      %116 = sbr.rel (0) target = $region37
    $region36: #{tpu_custom_call.1} parent=1 // pred_region
      %s118 = ssub.s32 2048, 2048
      %119 = vsyncadd [#allocation16], %s118
      %s120 = sshll.u32 [#allocation17], 4
      %s121 = int_to_ptr.vmem [resolvable:$true] %s120
      %126 = dma.hbm_to_vmem [thread:$0]  %s8, 2048, %s121, [#allocation16], 128, 128, 8
    $region37: #{tpu_custom_call.1} parent=1 // pred_fallthru
      _
    // Predicated region
    $region38: #{tpu_custom_call.1} parent=1 // pred_check
      _
    $region39: #{tpu_custom_call.1} parent=1 // pred_check_branch
      %128 = sbr.rel (0) target = $region41
    $region40: #{tpu_custom_call.1} parent=1 // pred_region
      %129 = dma.done [#allocation4], 64
    $region41: #{tpu_custom_call.1} parent=1 // pred_fallthru
      _
    // Predicated region
    $region42: #{tpu_custom_call.1} parent=1 // pred_check
      _
    $region43: #{tpu_custom_call.1} parent=1 // pred_check_branch
      %131 = sbr.rel (0) target = $region45
    $region44: #{tpu_custom_call.1} parent=1 // pred_region
      %132 = dma.done [#allocation7], 64
    $region45: #{tpu_custom_call.1} parent=1 // pred_fallthru
      _
    // Predicated region
    $region46: #{tpu_custom_call.1} parent=1 // pred_check
      _
    $region47: #{tpu_custom_call.1} parent=1 // pred_check_branch
      %134 = sbr.rel (0) target = $region49
    $region48: #{tpu_custom_call.1} parent=1 // pred_region
      %135 = dma.done [#allocation7], 2048
    $region49: #{tpu_custom_call.1} parent=1 // pred_fallthru
      _
    // Predicated region
    $region50: #{tpu_custom_call.1} parent=1 // pred_check
      _
    $region51: #{tpu_custom_call.1} parent=1 // pred_check_branch
      %137 = sbr.rel (0) target = $region53
    $region52: #{tpu_custom_call.1} parent=1 // pred_region
      %138 = dma.done [#allocation10], 2048
    $region53: #{tpu_custom_call.1} parent=1 // pred_fallthru
      _
    // Predicated region
    $region54: #{tpu_custom_call.1} parent=1 // pred_check
      _
    $region55: #{tpu_custom_call.1} parent=1 // pred_check_branch
      %140 = sbr.rel (0) target = $region57
    $region56: #{tpu_custom_call.1} parent=1 // pred_region
      %141 = dma.done [#allocation10], 2048
    $region57: #{tpu_custom_call.1} parent=1 // pred_fallthru
      _
    // Predicated region
    $region58: #{tpu_custom_call.1} parent=1 // pred_check
      _
    $region59: #{tpu_custom_call.1} parent=1 // pred_check_branch
      %143 = sbr.rel (0) target = $region61
    $region60: #{tpu_custom_call.1} parent=1 // pred_region
      %144 = dma.done [#allocation13], 2048
    $region61: #{tpu_custom_call.1} parent=1 // pred_fallthru
      _
    // Predicated region
    $region62: #{tpu_custom_call.1} parent=1 // pred_check
      _
    $region63: #{tpu_custom_call.1} parent=1 // pred_check_branch
      %146 = sbr.rel (0) target = $region65
    $region64: #{tpu_custom_call.1} parent=1 // pred_region
      %147 = dma.done [#allocation13], 2048
    $region65: #{tpu_custom_call.1} parent=1 // pred_fallthru
      _
    // Predicated region
    $region66: #{tpu_custom_call.1} parent=1 // pred_check
      _
    $region67: #{tpu_custom_call.1} parent=1 // pred_check_branch
      %149 = sbr.rel (0) target = $region69
    $region68: #{tpu_custom_call.1} parent=1 // pred_region
      %150 = dma.done [#allocation16], 2048
    $region69: #{tpu_custom_call.1} parent=1 // pred_fallthru
      _
    // Predicated region
    $region70: #{tpu_custom_call.1} parent=1 // pred_check
      _
    $region71: #{tpu_custom_call.1} parent=1 // pred_check_branch
      %152 = sbr.rel (0) target = $region73
    $region72: #{tpu_custom_call.1} parent=1 // pred_region
      %153 = dma.done [#allocation16], 2048
    $region73: #{tpu_custom_call.1} parent=1 // pred_fallthru
      _
    %p154 = scmp.eq.s32.totalorder 0, 0
    // Predicated region
    $region74: #{tpu_custom_call.1} parent=1 // pred_check
      %p155 = pneg %p154
    $region75: #{tpu_custom_call.1} parent=1 // pred_check_branch
      %157 = sbr.rel (%p155) target = $region77
    $region76: #{tpu_custom_call.1} parent=1 // pred_region
      %v158 = vld [vmem:[#allocation6] sm:$0xf]
      %159 = vst [vmem:[#allocation2] sm:$0xf] %v158
    $region77: #{tpu_custom_call.1} parent=1 // pred_fallthru
      _
    %v160 = vlaneseq
    %v161 = vand.u32 %v160, 127
    %vm162 = vcmp.ge.s32.totalorder %v161, 48
    %vm163 = vcmp.le.s32.totalorder %v161, 112
    %vm164 = vmand %vm162, %vm163
    %v165 = vsel %vm164, 1, 0
    %v166 = vcvt.s32.f32 %v165
    %v167 = vld [vmem:[#allocation2] sm:$0xf]
    %v168 = vld [vmem:[#allocation3] sm:$0xf]
    %v169 = vadd.f32 %v167, %v168
    %v170 = vld [vmem:[#allocation8] sm:$0xff]
    %v171 = vld [vmem:[#allocation8 + $0x8] sm:$0xff]
    %v172 = vld [vmem:[#allocation8 + $0x10] sm:$0xff]
    %v173 = vld [vmem:[#allocation8 + $0x18] sm:$0xff]
    %v174 = vld [vmem:[#allocation8 + $0x20] sm:$0xff]
    %v175 = vld [vmem:[#allocation8 + $0x28] sm:$0xff]
    %v176 = vld [vmem:[#allocation8 + $0x30] sm:$0xff]
    %v177 = vld [vmem:[#allocation8 + $0x38] sm:$0xff]
    %v178 = vld [vmem:[#allocation8 + $0x40] sm:$0xff]
    %v179 = vld [vmem:[#allocation8 + $0x48] sm:$0xff]
    %v180 = vld [vmem:[#allocation8 + $0x50] sm:$0xff]
    %v181 = vld [vmem:[#allocation8 + $0x58] sm:$0xff]
    %v182 = vld [vmem:[#allocation8 + $0x60] sm:$0xff]
    %v183 = vld [vmem:[#allocation8 + $0x68] sm:$0xff]
    %v184 = vld [vmem:[#allocation8 + $0x70] sm:$0xff]
    %v185 = vld [vmem:[#allocation8 + $0x78] sm:$0xff]
    %186 = vmatprep.subr.mxu0 0.0
    %187 = vmatpush1.msra.mxu0 %v170
    %188 = vmatprep.subr.mxu0 0.0
    %189 = vmatpush1.msra.mxu0 %v171
    %190 = vmatprep.subr.mxu0 0.0
    %191 = vmatpush1.msra.mxu0 %v172
    %192 = vmatprep.subr.mxu0 0.0
    %193 = vmatpush1.msra.mxu0 %v173
    %194 = vmatprep.subr.mxu0 0.0
    %195 = vmatpush1.msra.mxu0 %v174
    %196 = vmatprep.subr.mxu0 0.0
    %197 = vmatpush1.msra.mxu0 %v175
    %198 = vmatprep.subr.mxu0 0.0
    %199 = vmatpush1.msra.mxu0 %v176
    %200 = vmatprep.subr.mxu0 0.0
    %201 = vmatpush1.msra.mxu0 %v177
    %202 = vmatprep.subr.mxu0 0.0
    %203 = vmatpush1.msra.mxu0 %v178
    %204 = vmatprep.subr.mxu0 0.0
    %205 = vmatpush1.msra.mxu0 %v179
    %206 = vmatprep.subr.mxu0 0.0
    %207 = vmatpush1.msra.mxu0 %v180
    %208 = vmatprep.subr.mxu0 0.0
    %209 = vmatpush1.msra.mxu0 %v181
    %210 = vmatprep.subr.mxu0 0.0
    %211 = vmatpush1.msra.mxu0 %v182
    %212 = vmatprep.subr.mxu0 0.0
    %213 = vmatpush1.msra.mxu0 %v183
    %214 = vmatprep.subr.mxu0 0.0
    %215 = vmatpush1.msra.mxu0 %v184
    %216 = vmatprep.subr.mxu0 0.0
    %217 = vmatpush1.msra.mxu0 %v185
    %218 = vmatprep.subr.mxu0 0.0
    %219 = vmatpush1.msra.mxu0 0.0
    %220 = vmatprep.subr.mxu0 0.0
    %221 = vmatpush1.msra.mxu0 0.0
    %222 = vmatprep.subr.mxu0 0.0
    %223 = vmatpush1.msra.mxu0 0.0
    %224 = vmatprep.subr.mxu0 0.0
    %225 = vmatpush1.msra.mxu0 0.0
    %226 = vmatprep.subr.mxu0 0.0
    %227 = vmatpush1.msra.mxu0 0.0
    %228 = vmatprep.subr.mxu0 0.0
    %229 = vmatpush1.msra.mxu0 0.0
    %230 = vmatprep.subr.mxu0 0.0
    %231 = vmatpush1.msra.mxu0 0.0
    %232 = vmatprep.subr.mxu0 0.0
    %233 = vmatpush1.msra.mxu0 0.0
    %234 = vmatprep.subr.mxu0 0.0
    %235 = vmatpush1.msra.mxu0 0.0
    %236 = vmatprep.subr.mxu0 0.0
    %237 = vmatpush1.msra.mxu0 0.0
    %238 = vmatprep.subr.mxu0 0.0
    %239 = vmatpush1.msra.mxu0 0.0
    %240 = vmatprep.subr.mxu0 0.0
    %241 = vmatpush1.msra.mxu0 0.0
    %242 = vmatprep.subr.mxu0 0.0
    %243 = vmatpush1.msra.mxu0 0.0
    %244 = vmatprep.subr.mxu0 0.0
    %245 = vmatpush1.msra.mxu0 0.0
    %246 = vmatprep.subr.mxu0 0.0
    %247 = vmatpush1.msra.mxu0 0.0
    %248 = vmatprep.subr.mxu0 0.0
    %249 = vmatpush1.msra.mxu0 0.0
    %250 = vmatprep.mubr.f32.mxu0 0.0
    %251 = vmatmul.mubr.f32.gmra.mrb[0].mxu0 %v169
    %v252 = vpop.f32.mrb[0].mxu0
    %v253 = vadd.f32 0.0, %v252
    %v254 = vpop.f32.mrb[0].mxu0
    %255 = vdwg.mxu0
    %v256 = vmax.f32 %v253, 0.0
    %v257 = vmul.f32 %v167, %v166
    %v258 = vadd.f32 %v257, %v256
    %v259 = vld [vmem:[#allocation9] sm:$0xff]
    %v260 = vld [vmem:[#allocation9 + $0x8] sm:$0xff]
    %v261 = vld [vmem:[#allocation9 + $0x10] sm:$0xff]
    %v262 = vld [vmem:[#allocation9 + $0x18] sm:$0xff]
    %v263 = vld [vmem:[#allocation9 + $0x20] sm:$0xff]
    %v264 = vld [vmem:[#allocation9 + $0x28] sm:$0xff]
    %v265 = vld [vmem:[#allocation9 + $0x30] sm:$0xff]
    %v266 = vld [vmem:[#allocation9 + $0x38] sm:$0xff]
    %v267 = vld [vmem:[#allocation9 + $0x40] sm:$0xff]
    %v268 = vld [vmem:[#allocation9 + $0x48] sm:$0xff]
    %v269 = vld [vmem:[#allocation9 + $0x50] sm:$0xff]
    %v270 = vld [vmem:[#allocation9 + $0x58] sm:$0xff]
    %v271 = vld [vmem:[#allocation9 + $0x60] sm:$0xff]
    %v272 = vld [vmem:[#allocation9 + $0x68] sm:$0xff]
    %v273 = vld [vmem:[#allocation9 + $0x70] sm:$0xff]
    %v274 = vld [vmem:[#allocation9 + $0x78] sm:$0xff]
    %275 = vmatprep.subr.mxu0 0.0
    %276 = vmatpush1.msra.mxu0 %v259
    %277 = vmatprep.subr.mxu0 0.0
    %278 = vmatpush1.msra.mxu0 %v260
    %279 = vmatprep.subr.mxu0 0.0
    %280 = vmatpush1.msra.mxu0 %v261
    %281 = vmatprep.subr.mxu0 0.0
    %282 = vmatpush1.msra.mxu0 %v262
    %283 = vmatprep.subr.mxu0 0.0
    %284 = vmatpush1.msra.mxu0 %v263
    %285 = vmatprep.subr.mxu0 0.0
    %286 = vmatpush1.msra.mxu0 %v264
    %287 = vmatprep.subr.mxu0 0.0
    %288 = vmatpush1.msra.mxu0 %v265
    %289 = vmatprep.subr.mxu0 0.0
    %290 = vmatpush1.msra.mxu0 %v266
    %291 = vmatprep.subr.mxu0 0.0
    %292 = vmatpush1.msra.mxu0 %v267
    %293 = vmatprep.subr.mxu0 0.0
    %294 = vmatpush1.msra.mxu0 %v268
    %295 = vmatprep.subr.mxu0 0.0
    %296 = vmatpush1.msra.mxu0 %v269
    %297 = vmatprep.subr.mxu0 0.0
    %298 = vmatpush1.msra.mxu0 %v270
    %299 = vmatprep.subr.mxu0 0.0
    %300 = vmatpush1.msra.mxu0 %v271
    %301 = vmatprep.subr.mxu0 0.0
    %302 = vmatpush1.msra.mxu0 %v272
    %303 = vmatprep.subr.mxu0 0.0
    %304 = vmatpush1.msra.mxu0 %v273
    %305 = vmatprep.subr.mxu0 0.0
    %306 = vmatpush1.msra.mxu0 %v274
    %307 = vmatprep.subr.mxu0 0.0
    %308 = vmatpush1.msra.mxu0 0.0
    %309 = vmatprep.subr.mxu0 0.0
    %310 = vmatpush1.msra.mxu0 0.0
    %311 = vmatprep.subr.mxu0 0.0
    %312 = vmatpush1.msra.mxu0 0.0
    %313 = vmatprep.subr.mxu0 0.0
    %314 = vmatpush1.msra.mxu0 0.0
    %315 = vmatprep.subr.mxu0 0.0
    %316 = vmatpush1.msra.mxu0 0.0
    %317 = vmatprep.subr.mxu0 0.0
    %318 = vmatpush1.msra.mxu0 0.0
    %319 = vmatprep.subr.mxu0 0.0
    %320 = vmatpush1.msra.mxu0 0.0
    %321 = vmatprep.subr.mxu0 0.0
    %322 = vmatpush1.msra.mxu0 0.0
    %323 = vmatprep.subr.mxu0 0.0
    %324 = vmatpush1.msra.mxu0 0.0
    %325 = vmatprep.subr.mxu0 0.0
    %326 = vmatpush1.msra.mxu0 0.0
    %327 = vmatprep.subr.mxu0 0.0
    %328 = vmatpush1.msra.mxu0 0.0
    %329 = vmatprep.subr.mxu0 0.0
    %330 = vmatpush1.msra.mxu0 0.0
    %331 = vmatprep.subr.mxu0 0.0
    %332 = vmatpush1.msra.mxu0 0.0
    %333 = vmatprep.subr.mxu0 0.0
    %334 = vmatpush1.msra.mxu0 0.0
    %335 = vmatprep.subr.mxu0 0.0
    %336 = vmatpush1.msra.mxu0 0.0
    %337 = vmatprep.subr.mxu0 0.0
    %338 = vmatpush1.msra.mxu0 0.0
    %339 = vmatprep.mubr.f32.mxu0 0.0
    %340 = vmatmul.mubr.f32.gmra.mrb[0].mxu0 %v258
    %v341 = vpop.f32.mrb[0].mxu0
    %v342 = vadd.f32 0.0, %v341
    %v343 = vpop.f32.mrb[0].mxu0
    %344 = vdwg.mxu0
    %345 = vrot.lane.b32.xlu0 %v342, 64
    %v346 = vpop.permute.xlu0 %345
    %v347 = vand.u32 2147483647, %v342
    %v348 = vmul.f32 %v347, %v347
    %v349 = vmul.f32 %v348, %v348
    %v350 = vmul.f32 %v349, %v347
    %v351 = vld [vmem:[#allocation11] sm:$0xff]
    %v352 = vld [vmem:[#allocation11 + $0x8] sm:$0xff]
    %v353 = vld [vmem:[#allocation11 + $0x10] sm:$0xff]
    %v354 = vld [vmem:[#allocation11 + $0x18] sm:$0xff]
    %v355 = vld [vmem:[#allocation11 + $0x20] sm:$0xff]
    %v356 = vld [vmem:[#allocation11 + $0x28] sm:$0xff]
    %v357 = vld [vmem:[#allocation11 + $0x30] sm:$0xff]
    %v358 = vld [vmem:[#allocation11 + $0x38] sm:$0xff]
    %v359 = vld [vmem:[#allocation11 + $0x40] sm:$0xff]
    %v360 = vld [vmem:[#allocation11 + $0x48] sm:$0xff]
    %v361 = vld [vmem:[#allocation11 + $0x50] sm:$0xff]
    %v362 = vld [vmem:[#allocation11 + $0x58] sm:$0xff]
    %v363 = vld [vmem:[#allocation11 + $0x60] sm:$0xff]
    %v364 = vld [vmem:[#allocation11 + $0x68] sm:$0xff]
    %v365 = vld [vmem:[#allocation11 + $0x70] sm:$0xff]
    %v366 = vld [vmem:[#allocation11 + $0x78] sm:$0xff]
    %367 = vmatprep.subr.mxu0 0.0
    %368 = vmatpush1.msra.mxu0 %v351
    %369 = vmatprep.subr.mxu0 0.0
    %370 = vmatpush1.msra.mxu0 %v352
    %371 = vmatprep.subr.mxu0 0.0
    %372 = vmatpush1.msra.mxu0 %v353
    %373 = vmatprep.subr.mxu0 0.0
    %374 = vmatpush1.msra.mxu0 %v354
    %375 = vmatprep.subr.mxu0 0.0
    %376 = vmatpush1.msra.mxu0 %v355
    %377 = vmatprep.subr.mxu0 0.0
    %378 = vmatpush1.msra.mxu0 %v356
    %379 = vmatprep.subr.mxu0 0.0
    %380 = vmatpush1.msra.mxu0 %v357
    %381 = vmatprep.subr.mxu0 0.0
    %382 = vmatpush1.msra.mxu0 %v358
    %383 = vmatprep.subr.mxu0 0.0
    %384 = vmatpush1.msra.mxu0 %v359
    %385 = vmatprep.subr.mxu0 0.0
    %386 = vmatpush1.msra.mxu0 %v360
    %387 = vmatprep.subr.mxu0 0.0
    %388 = vmatpush1.msra.mxu0 %v361
    %389 = vmatprep.subr.mxu0 0.0
    %390 = vmatpush1.msra.mxu0 %v362
    %391 = vmatprep.subr.mxu0 0.0
    %392 = vmatpush1.msra.mxu0 %v363
    %393 = vmatprep.subr.mxu0 0.0
    %394 = vmatpush1.msra.mxu0 %v364
    %395 = vmatprep.subr.mxu0 0.0
    %396 = vmatpush1.msra.mxu0 %v365
    %397 = vmatprep.subr.mxu0 0.0
    %398 = vmatpush1.msra.mxu0 %v366
    %399 = vmatprep.subr.mxu0 0.0
    %400 = vmatpush1.msra.mxu0 0.0
    %401 = vmatprep.subr.mxu0 0.0
    %402 = vmatpush1.msra.mxu0 0.0
    %403 = vmatprep.subr.mxu0 0.0
    %404 = vmatpush1.msra.mxu0 0.0
    %405 = vmatprep.subr.mxu0 0.0
    %406 = vmatpush1.msra.mxu0 0.0
    %407 = vmatprep.subr.mxu0 0.0
    %408 = vmatpush1.msra.mxu0 0.0
    %409 = vmatprep.subr.mxu0 0.0
    %410 = vmatpush1.msra.mxu0 0.0
    %411 = vmatprep.subr.mxu0 0.0
    %412 = vmatpush1.msra.mxu0 0.0
    %413 = vmatprep.subr.mxu0 0.0
    %414 = vmatpush1.msra.mxu0 0.0
    %415 = vmatprep.subr.mxu0 0.0
    %416 = vmatpush1.msra.mxu0 0.0
    %417 = vmatprep.subr.mxu0 0.0
    %418 = vmatpush1.msra.mxu0 0.0
    %419 = vmatprep.subr.mxu0 0.0
    %420 = vmatpush1.msra.mxu0 0.0
    %421 = vmatprep.subr.mxu0 0.0
    %422 = vmatpush1.msra.mxu0 0.0
    %423 = vmatprep.subr.mxu0 0.0
    %424 = vmatpush1.msra.mxu0 0.0
    %425 = vmatprep.subr.mxu0 0.0
    %426 = vmatpush1.msra.mxu0 0.0
    %427 = vmatprep.subr.mxu0 0.0
    %428 = vmatpush1.msra.mxu0 0.0
    %429 = vmatprep.subr.mxu0 0.0
    %430 = vmatpush1.msra.mxu0 0.0
    %431 = vmatprep.mubr.f32.mxu0 0.0
    %432 = vmatmul.mubr.f32.gmra.mrb[0].mxu0 %v350
    %v433 = vpop.f32.mrb[0].mxu0
    %v434 = vadd.f32 0.0, %v433
    %v435 = vpop.f32.mrb[0].mxu0
    %436 = vdwg.mxu0
    %437 = vrot.lane.b32.xlu0 %v434, 64
    %v438 = vpop.permute.xlu0 %437
    %v439 = vmul.f32 %v434, %v438
    %v440 = vmax.f32 %v439, 1e-37
    %v441 = vlog2.pop %v440
    %v442 = vmul.f32 %v441, 0.6931472
    %v443 = vmul.f32 %v442, -0.2
    %v444 = vmul.f32 %v443, 1.442695
    %v445 = vpow.pop %v444
    %v446 = vmul.f32 %v342, %v445
    %v447 = vmul.f32 %v446, %v346
    %v448 = vld [vmem:[#allocation12] sm:$0xff]
    %v449 = vld [vmem:[#allocation12 + $0x8] sm:$0xff]
    %v450 = vld [vmem:[#allocation12 + $0x10] sm:$0xff]
    %v451 = vld [vmem:[#allocation12 + $0x18] sm:$0xff]
    %v452 = vld [vmem:[#allocation12 + $0x20] sm:$0xff]
    %v453 = vld [vmem:[#allocation12 + $0x28] sm:$0xff]
    %v454 = vld [vmem:[#allocation12 + $0x30] sm:$0xff]
    %v455 = vld [vmem:[#allocation12 + $0x38] sm:$0xff]
    %v456 = vld [vmem:[#allocation12 + $0x40] sm:$0xff]
    %v457 = vld [vmem:[#allocation12 + $0x48] sm:$0xff]
    %v458 = vld [vmem:[#allocation12 + $0x50] sm:$0xff]
    %v459 = vld [vmem:[#allocation12 + $0x58] sm:$0xff]
    %v460 = vld [vmem:[#allocation12 + $0x60] sm:$0xff]
    %v461 = vld [vmem:[#allocation12 + $0x68] sm:$0xff]
    %v462 = vld [vmem:[#allocation12 + $0x70] sm:$0xff]
    %v463 = vld [vmem:[#allocation12 + $0x78] sm:$0xff]
    %464 = vmatprep.subr.mxu0 0.0
    %465 = vmatpush1.msra.mxu0 %v448
    %466 = vmatprep.subr.mxu0 0.0
    %467 = vmatpush1.msra.mxu0 %v449
    %468 = vmatprep.subr.mxu0 0.0
    %469 = vmatpush1.msra.mxu0 %v450
    %470 = vmatprep.subr.mxu0 0.0
    %471 = vmatpush1.msra.mxu0 %v451
    %472 = vmatprep.subr.mxu0 0.0
    %473 = vmatpush1.msra.mxu0 %v452
    %474 = vmatprep.subr.mxu0 0.0
    %475 = vmatpush1.msra.mxu0 %v453
    %476 = vmatprep.subr.mxu0 0.0
    %477 = vmatpush1.msra.mxu0 %v454
    %478 = vmatprep.subr.mxu0 0.0
    %479 = vmatpush1.msra.mxu0 %v455
    %480 = vmatprep.subr.mxu0 0.0
    %481 = vmatpush1.msra.mxu0 %v456
    %482 = vmatprep.subr.mxu0 0.0
    %483 = vmatpush1.msra.mxu0 %v457
    %484 = vmatprep.subr.mxu0 0.0
    %485 = vmatpush1.msra.mxu0 %v458
    %486 = vmatprep.subr.mxu0 0.0
    %487 = vmatpush1.msra.mxu0 %v459
    %488 = vmatprep.subr.mxu0 0.0
    %489 = vmatpush1.msra.mxu0 %v460
    %490 = vmatprep.subr.mxu0 0.0
    %491 = vmatpush1.msra.mxu0 %v461
    %492 = vmatprep.subr.mxu0 0.0
    %493 = vmatpush1.msra.mxu0 %v462
    %494 = vmatprep.subr.mxu0 0.0
    %495 = vmatpush1.msra.mxu0 %v463
    %496 = vmatprep.subr.mxu0 0.0
    %497 = vmatpush1.msra.mxu0 0.0
    %498 = vmatprep.subr.mxu0 0.0
    %499 = vmatpush1.msra.mxu0 0.0
    %500 = vmatprep.subr.mxu0 0.0
    %501 = vmatpush1.msra.mxu0 0.0
    %502 = vmatprep.subr.mxu0 0.0
    %503 = vmatpush1.msra.mxu0 0.0
    %504 = vmatprep.subr.mxu0 0.0
    %505 = vmatpush1.msra.mxu0 0.0
    %506 = vmatprep.subr.mxu0 0.0
    %507 = vmatpush1.msra.mxu0 0.0
    %508 = vmatprep.subr.mxu0 0.0
    %509 = vmatpush1.msra.mxu0 0.0
    %510 = vmatprep.subr.mxu0 0.0
    %511 = vmatpush1.msra.mxu0 0.0
    %512 = vmatprep.subr.mxu0 0.0
    %513 = vmatpush1.msra.mxu0 0.0
    %514 = vmatprep.subr.mxu0 0.0
    %515 = vmatpush1.msra.mxu0 0.0
    %516 = vmatprep.subr.mxu0 0.0
    %517 = vmatpush1.msra.mxu0 0.0
    %518 = vmatprep.subr.mxu0 0.0
    %519 = vmatpush1.msra.mxu0 0.0
    %520 = vmatprep.subr.mxu0 0.0
    %521 = vmatpush1.msra.mxu0 0.0
    %522 = vmatprep.subr.mxu0 0.0
    %523 = vmatpush1.msra.mxu0 0.0
    %524 = vmatprep.subr.mxu0 0.0
    %525 = vmatpush1.msra.mxu0 0.0
    %526 = vmatprep.subr.mxu0 0.0
    %527 = vmatpush1.msra.mxu0 0.0
    %528 = vmatprep.mubr.f32.mxu0 0.0
    %529 = vmatmul.mubr.f32.gmra.mrb[0].mxu0 %v447
    %v530 = vpop.f32.mrb[0].mxu0
    %v531 = vadd.f32 0.0, %v530
    %v532 = vpop.f32.mrb[0].mxu0
    %533 = vdwg.mxu0
    %v534 = vld [vmem:[#allocation15] sm:$0xff]
    %v535 = vld [vmem:[#allocation15 + $0x8] sm:$0xff]
    %v536 = vld [vmem:[#allocation15 + $0x10] sm:$0xff]
    %v537 = vld [vmem:[#allocation15 + $0x18] sm:$0xff]
    %v538 = vld [vmem:[#allocation15 + $0x20] sm:$0xff]
    %v539 = vld [vmem:[#allocation15 + $0x28] sm:$0xff]
    %v540 = vld [vmem:[#allocation15 + $0x30] sm:$0xff]
    %v541 = vld [vmem:[#allocation15 + $0x38] sm:$0xff]
    %v542 = vld [vmem:[#allocation15 + $0x40] sm:$0xff]
    %v543 = vld [vmem:[#allocation15 + $0x48] sm:$0xff]
    %v544 = vld [vmem:[#allocation15 + $0x50] sm:$0xff]
    %v545 = vld [vmem:[#allocation15 + $0x58] sm:$0xff]
    %v546 = vld [vmem:[#allocation15 + $0x60] sm:$0xff]
    %v547 = vld [vmem:[#allocation15 + $0x68] sm:$0xff]
    %v548 = vld [vmem:[#allocation15 + $0x70] sm:$0xff]
    %v549 = vld [vmem:[#allocation15 + $0x78] sm:$0xff]
    %550 = vmatprep.subr.mxu0 0.0
    %551 = vmatpush1.msra.mxu0 %v534
    %552 = vmatprep.subr.mxu0 0.0
    %553 = vmatpush1.msra.mxu0 %v535
    %554 = vmatprep.subr.mxu0 0.0
    %555 = vmatpush1.msra.mxu0 %v536
    %556 = vmatprep.subr.mxu0 0.0
    %557 = vmatpush1.msra.mxu0 %v537
    %558 = vmatprep.subr.mxu0 0.0
    %559 = vmatpush1.msra.mxu0 %v538
    %560 = vmatprep.subr.mxu0 0.0
    %561 = vmatpush1.msra.mxu0 %v539
    %562 = vmatprep.subr.mxu0 0.0
    %563 = vmatpush1.msra.mxu0 %v540
    %564 = vmatprep.subr.mxu0 0.0
    %565 = vmatpush1.msra.mxu0 %v541
    %566 = vmatprep.subr.mxu0 0.0
    %567 = vmatpush1.msra.mxu0 %v542
    %568 = vmatprep.subr.mxu0 0.0
    %569 = vmatpush1.msra.mxu0 %v543
    %570 = vmatprep.subr.mxu0 0.0
    %571 = vmatpush1.msra.mxu0 %v544
    %572 = vmatprep.subr.mxu0 0.0
    %573 = vmatpush1.msra.mxu0 %v545
    %574 = vmatprep.subr.mxu0 0.0
    %575 = vmatpush1.msra.mxu0 %v546
    %576 = vmatprep.subr.mxu0 0.0
    %577 = vmatpush1.msra.mxu0 %v547
    %578 = vmatprep.subr.mxu0 0.0
    %579 = vmatpush1.msra.mxu0 %v548
    %580 = vmatprep.subr.mxu0 0.0
    %581 = vmatpush1.msra.mxu0 %v549
    %582 = vmatprep.subr.mxu0 0.0
    %583 = vmatpush1.msra.mxu0 0.0
    %584 = vmatprep.subr.mxu0 0.0
    %585 = vmatpush1.msra.mxu0 0.0
    %586 = vmatprep.subr.mxu0 0.0
    %587 = vmatpush1.msra.mxu0 0.0
    %588 = vmatprep.subr.mxu0 0.0
    %589 = vmatpush1.msra.mxu0 0.0
    %590 = vmatprep.subr.mxu0 0.0
    %591 = vmatpush1.msra.mxu0 0.0
    %592 = vmatprep.subr.mxu0 0.0
    %593 = vmatpush1.msra.mxu0 0.0
    %594 = vmatprep.subr.mxu0 0.0
    %595 = vmatpush1.msra.mxu0 0.0
    %596 = vmatprep.subr.mxu0 0.0
    %597 = vmatpush1.msra.mxu0 0.0
    %598 = vmatprep.subr.mxu0 0.0
    %599 = vmatpush1.msra.mxu0 0.0
    %600 = vmatprep.subr.mxu0 0.0
    %601 = vmatpush1.msra.mxu0 0.0
    %602 = vmatprep.subr.mxu0 0.0
    %603 = vmatpush1.msra.mxu0 0.0
    %604 = vmatprep.subr.mxu0 0.0
    %605 = vmatpush1.msra.mxu0 0.0
    %606 = vmatprep.subr.mxu0 0.0
    %607 = vmatpush1.msra.mxu0 0.0
    %608 = vmatprep.subr.mxu0 0.0
    %609 = vmatpush1.msra.mxu0 0.0
    %610 = vmatprep.subr.mxu0 0.0
    %611 = vmatpush1.msra.mxu0 0.0
    %612 = vmatprep.subr.mxu0 0.0
    %613 = vmatpush1.msra.mxu0 0.0
    %614 = vmatprep.mubr.f32.mxu0 0.0
    %615 = vmatmul.mubr.f32.gmra.mrb[0].mxu0 %v342
    %v616 = vpop.f32.mrb[0].mxu0
    %v617 = vadd.f32 0.0, %v616
    %v618 = vpop.f32.mrb[0].mxu0
    %619 = vdwg.mxu0
    %v620 = vmul.f32 %v531, %v617
    %v621 = vld [vmem:[#allocation14] sm:$0xff]
    %v622 = vld [vmem:[#allocation14 + $0x8] sm:$0xff]
    %v623 = vld [vmem:[#allocation14 + $0x10] sm:$0xff]
    %v624 = vld [vmem:[#allocation14 + $0x18] sm:$0xff]
    %v625 = vld [vmem:[#allocation14 + $0x20] sm:$0xff]
    %v626 = vld [vmem:[#allocation14 + $0x28] sm:$0xff]
    %v627 = vld [vmem:[#allocation14 + $0x30] sm:$0xff]
    %v628 = vld [vmem:[#allocation14 + $0x38] sm:$0xff]
    %v629 = vld [vmem:[#allocation14 + $0x40] sm:$0xff]
    %v630 = vld [vmem:[#allocation14 + $0x48] sm:$0xff]
    %v631 = vld [vmem:[#allocation14 + $0x50] sm:$0xff]
    %v632 = vld [vmem:[#allocation14 + $0x58] sm:$0xff]
    %v633 = vld [vmem:[#allocation14 + $0x60] sm:$0xff]
    %v634 = vld [vmem:[#allocation14 + $0x68] sm:$0xff]
    %v635 = vld [vmem:[#allocation14 + $0x70] sm:$0xff]
    %v636 = vld [vmem:[#allocation14 + $0x78] sm:$0xff]
    %637 = vmatprep.subr.mxu0 0.0
    %638 = vmatpush1.msra.mxu0 %v621
    %639 = vmatprep.subr.mxu0 0.0
    %640 = vmatpush1.msra.mxu0 %v622
    %641 = vmatprep.subr.mxu0 0.0
    %642 = vmatpush1.msra.mxu0 %v623
    %643 = vmatprep.subr.mxu0 0.0
    %644 = vmatpush1.msra.mxu0 %v624
    %645 = vmatprep.subr.mxu0 0.0
    %646 = vmatpush1.msra.mxu0 %v625
    %647 = vmatprep.subr.mxu0 0.0
    %648 = vmatpush1.msra.mxu0 %v626
    %649 = vmatprep.subr.mxu0 0.0
    %650 = vmatpush1.msra.mxu0 %v627
    %651 = vmatprep.subr.mxu0 0.0
    %652 = vmatpush1.msra.mxu0 %v628
    %653 = vmatprep.subr.mxu0 0.0
    %654 = vmatpush1.msra.mxu0 %v629
    %655 = vmatprep.subr.mxu0 0.0
    %656 = vmatpush1.msra.mxu0 %v630
    %657 = vmatprep.subr.mxu0 0.0
    %658 = vmatpush1.msra.mxu0 %v631
    %659 = vmatprep.subr.mxu0 0.0
    %660 = vmatpush1.msra.mxu0 %v632
    %661 = vmatprep.subr.mxu0 0.0
    %662 = vmatpush1.msra.mxu0 %v633
    %663 = vmatprep.subr.mxu0 0.0
    %664 = vmatpush1.msra.mxu0 %v634
    %665 = vmatprep.subr.mxu0 0.0
    %666 = vmatpush1.msra.mxu0 %v635
    %667 = vmatprep.subr.mxu0 0.0
    %668 = vmatpush1.msra.mxu0 %v636
    %669 = vmatprep.subr.mxu0 0.0
    %670 = vmatpush1.msra.mxu0 0.0
    %671 = vmatprep.subr.mxu0 0.0
    %672 = vmatpush1.msra.mxu0 0.0
    %673 = vmatprep.subr.mxu0 0.0
    %674 = vmatpush1.msra.mxu0 0.0
    %675 = vmatprep.subr.mxu0 0.0
    %676 = vmatpush1.msra.mxu0 0.0
    %677 = vmatprep.subr.mxu0 0.0
    %678 = vmatpush1.msra.mxu0 0.0
    %679 = vmatprep.subr.mxu0 0.0
    %680 = vmatpush1.msra.mxu0 0.0
    %681 = vmatprep.subr.mxu0 0.0
    %682 = vmatpush1.msra.mxu0 0.0
    %683 = vmatprep.subr.mxu0 0.0
    %684 = vmatpush1.msra.mxu0 0.0
    %685 = vmatprep.subr.mxu0 0.0
    %686 = vmatpush1.msra.mxu0 0.0
    %687 = vmatprep.subr.mxu0 0.0
    %688 = vmatpush1.msra.mxu0 0.0
    %689 = vmatprep.subr.mxu0 0.0
    %690 = vmatpush1.msra.mxu0 0.0
    %691 = vmatprep.subr.mxu0 0.0
    %692 = vmatpush1.msra.mxu0 0.0
    %693 = vmatprep.subr.mxu0 0.0
    %694 = vmatpush1.msra.mxu0 0.0
    %695 = vmatprep.subr.mxu0 0.0
    %696 = vmatpush1.msra.mxu0 0.0
    %697 = vmatprep.subr.mxu0 0.0
    %698 = vmatpush1.msra.mxu0 0.0
    %699 = vmatprep.subr.mxu0 0.0
    %700 = vmatpush1.msra.mxu0 0.0
    %701 = vmatprep.mubr.f32.mxu0 0.0
    %702 = vmatmul.mubr.f32.gmra.mrb[0].mxu0 %v447
    %v703 = vpop.f32.mrb[0].mxu0
    %v704 = vadd.f32 0.0, %v703
    %v705 = vpop.f32.mrb[0].mxu0
    %706 = vdwg.mxu0
    %v707 = vld [vmem:[#allocation17] sm:$0xff]
    %v708 = vld [vmem:[#allocation17 + $0x8] sm:$0xff]
    %v709 = vld [vmem:[#allocation17 + $0x10] sm:$0xff]
    %v710 = vld [vmem:[#allocation17 + $0x18] sm:$0xff]
    %v711 = vld [vmem:[#allocation17 + $0x20] sm:$0xff]
    %v712 = vld [vmem:[#allocation17 + $0x28] sm:$0xff]
    %v713 = vld [vmem:[#allocation17 + $0x30] sm:$0xff]
    %v714 = vld [vmem:[#allocation17 + $0x38] sm:$0xff]
    %v715 = vld [vmem:[#allocation17 + $0x40] sm:$0xff]
    %v716 = vld [vmem:[#allocation17 + $0x48] sm:$0xff]
    %v717 = vld [vmem:[#allocation17 + $0x50] sm:$0xff]
    %v718 = vld [vmem:[#allocation17 + $0x58] sm:$0xff]
    %v719 = vld [vmem:[#allocation17 + $0x60] sm:$0xff]
    %v720 = vld [vmem:[#allocation17 + $0x68] sm:$0xff]
    %v721 = vld [vmem:[#allocation17 + $0x70] sm:$0xff]
    %v722 = vld [vmem:[#allocation17 + $0x78] sm:$0xff]
    %723 = vmatprep.subr.mxu0 0.0
    %724 = vmatpush1.msra.mxu0 %v707
    %725 = vmatprep.subr.mxu0 0.0
    %726 = vmatpush1.msra.mxu0 %v708
    %727 = vmatprep.subr.mxu0 0.0
    %728 = vmatpush1.msra.mxu0 %v709
    %729 = vmatprep.subr.mxu0 0.0
    %730 = vmatpush1.msra.mxu0 %v710
    %731 = vmatprep.subr.mxu0 0.0
    %732 = vmatpush1.msra.mxu0 %v711
    %733 = vmatprep.subr.mxu0 0.0
    %734 = vmatpush1.msra.mxu0 %v712
    %735 = vmatprep.subr.mxu0 0.0
    %736 = vmatpush1.msra.mxu0 %v713
    %737 = vmatprep.subr.mxu0 0.0
    %738 = vmatpush1.msra.mxu0 %v714
    %739 = vmatprep.subr.mxu0 0.0
    %740 = vmatpush1.msra.mxu0 %v715
    %741 = vmatprep.subr.mxu0 0.0
    %742 = vmatpush1.msra.mxu0 %v716
    %743 = vmatprep.subr.mxu0 0.0
    %744 = vmatpush1.msra.mxu0 %v717
    %745 = vmatprep.subr.mxu0 0.0
    %746 = vmatpush1.msra.mxu0 %v718
    %747 = vmatprep.subr.mxu0 0.0
    %748 = vmatpush1.msra.mxu0 %v719
    %749 = vmatprep.subr.mxu0 0.0
    %750 = vmatpush1.msra.mxu0 %v720
    %751 = vmatprep.subr.mxu0 0.0
    %752 = vmatpush1.msra.mxu0 %v721
    %753 = vmatprep.subr.mxu0 0.0
    %754 = vmatpush1.msra.mxu0 %v722
    %755 = vmatprep.subr.mxu0 0.0
    %756 = vmatpush1.msra.mxu0 0.0
    %757 = vmatprep.subr.mxu0 0.0
    %758 = vmatpush1.msra.mxu0 0.0
    %759 = vmatprep.subr.mxu0 0.0
    %760 = vmatpush1.msra.mxu0 0.0
    %761 = vmatprep.subr.mxu0 0.0
    %762 = vmatpush1.msra.mxu0 0.0
    %763 = vmatprep.subr.mxu0 0.0
    %764 = vmatpush1.msra.mxu0 0.0
    %765 = vmatprep.subr.mxu0 0.0
    %766 = vmatpush1.msra.mxu0 0.0
    %767 = vmatprep.subr.mxu0 0.0
    %768 = vmatpush1.msra.mxu0 0.0
    %769 = vmatprep.subr.mxu0 0.0
    %770 = vmatpush1.msra.mxu0 0.0
    %771 = vmatprep.subr.mxu0 0.0
    %772 = vmatpush1.msra.mxu0 0.0
    %773 = vmatprep.subr.mxu0 0.0
    %774 = vmatpush1.msra.mxu0 0.0
    %775 = vmatprep.subr.mxu0 0.0
    %776 = vmatpush1.msra.mxu0 0.0
    %777 = vmatprep.subr.mxu0 0.0
    %778 = vmatpush1.msra.mxu0 0.0
    %779 = vmatprep.subr.mxu0 0.0
    %780 = vmatpush1.msra.mxu0 0.0
    %781 = vmatprep.subr.mxu0 0.0
    %782 = vmatpush1.msra.mxu0 0.0
    %783 = vmatprep.subr.mxu0 0.0
    %784 = vmatpush1.msra.mxu0 0.0
    %785 = vmatprep.subr.mxu0 0.0
    %786 = vmatpush1.msra.mxu0 0.0
    %787 = vmatprep.mubr.f32.mxu0 0.0
    %788 = vmatmul.mubr.f32.gmra.mrb[0].mxu0 %v342
    %v789 = vpop.f32.mrb[0].mxu0
    %v790 = vadd.f32 0.0, %v789
    %v791 = vpop.f32.mrb[0].mxu0
    %792 = vdwg.mxu0
    %v793 = vmul.f32 %v704, %v790
    %v794 = vadd.f32 %v620, %v793
    %v795 = vadd.f32 %v258, %v794
    %796 = vst [vmem:[#allocation18] sm:$0xf] %v256
    %797 = vst [vmem:[#allocation2] sm:$0xf] %v795
    %798 = vst [vmem:[#allocation19] sm:$0xf] %v795
    // Predicated region
    $region78: #{tpu_custom_call.1} parent=1 // pred_check
      _
    $region79: #{tpu_custom_call.1} parent=1 // pred_check_branch
      %800 = sbr.rel (0) target = $region81
    $region80: #{tpu_custom_call.1} parent=1 // pred_region
      %s802 = ssub.s32 64, 64
      %803 = vsyncadd [#allocation5], %s802
      %s805 = sshll.u32 [#allocation18], 4
      %s806 = int_to_ptr.vmem [resolvable:$true] %s805
      %808 = dma.vmem_to_hbm [thread:$0]  %s806, 64, %s9, [#allocation5]
    $region81: #{tpu_custom_call.1} parent=1 // pred_fallthru
      _
    // Predicated region
    $region82: #{tpu_custom_call.1} parent=1 // pred_check
      _
    $region83: #{tpu_custom_call.1} parent=1 // pred_check_branch
      %810 = sbr.rel (0) target = $region85
    $region84: #{tpu_custom_call.1} parent=1 // pred_region
      %s812 = ssub.s32 64, 64
      %813 = vsyncadd [#allocation20], %s812
      %s815 = sshll.u32 [#allocation19], 4
      %s816 = int_to_ptr.vmem [resolvable:$true] %s815
      %818 = dma.vmem_to_hbm [thread:$0]  %s816, 64, %s10, [#allocation20]
    $region85: #{tpu_custom_call.1} parent=1 // pred_fallthru
      _
    // Predicated region
    $region86: #{tpu_custom_call.1} parent=1 // pred_check
      _
    $region87: #{tpu_custom_call.1} parent=1 // pred_check_branch
      %820 = sbr.rel (0) target = $region89
    $region88: #{tpu_custom_call.1} parent=1 // pred_region
      %821 = dma.done [#allocation5], 64
    $region89: #{tpu_custom_call.1} parent=1 // pred_fallthru
      _
    // Predicated region
    $region90: #{tpu_custom_call.1} parent=1 // pred_check
      _
    $region91: #{tpu_custom_call.1} parent=1 // pred_check_branch
      %823 = sbr.rel (0) target = $region93
    $region92: #{tpu_custom_call.1} parent=1 // pred_region
      %824 = dma.done [#allocation20], 64
    $region93: #{tpu_custom_call.1} parent=1 // pred_fallthru
      _
    %825 = vsyncpa [#allocation4], 1
    %826 = vsyncpa [#allocation7], 1
    %827 = vsyncpa [#allocation10], 1
    %828 = vsyncpa [#allocation13], 1
    %829 = vsyncpa [#allocation16], 1
    %830 = vsyncpa [#allocation5], 1
    %831 = vsyncpa [#allocation20], 1

</llo_original>
